<compile_context>
chip_gen: v5e
topology: v5e:2x2
jax: 0.10.0
libtpu: 0.0.40
codegen_flags: <defaults>
</compile_context>

<pallas_src>
import jax
import jax.numpy as jnp
from jax.experimental import pallas as pl
from jax.experimental.pallas import tpu as pltpu


def _leaky_relu(x, slope=0.1):
    return jnp.where(x >= 0, x, slope * x)


def rcab_kernel(x_ref, band1_ref, b1_ref, band2_ref, b2_ref,
                wd_ref, bd_ref, wu_ref, bu_ref, o_ref):
    """One image per grid step; lane-dense (H, W*C) layout throughout."""
    H, WC = x_ref.shape
    x2 = x_ref[...].astype(jnp.float32)                        # (H, W*C)
    zrow = jnp.zeros((1, WC), jnp.float32)

    def conv3x3(inp, band_ref, b_ref):
        # Row-shifted slabs provide the dy = 0/1/2 vertical taps with a zero
        # H-halo; the horizontal taps + W zero-padding live in the banded
        # weight matrices, so each tap is one (H, W*C) @ (W*C, W*C) matmul.
        up = jnp.concatenate([zrow, inp[:H - 1, :]], axis=0)   # pad row h + 0
        dn = jnp.concatenate([inp[1:, :], zrow], axis=0)       # pad row h + 2
        acc = jnp.dot(up, band_ref[0], preferred_element_type=jnp.float32)
        acc += jnp.dot(inp, band_ref[1], preferred_element_type=jnp.float32)
        acc += jnp.dot(dn, band_ref[2], preferred_element_type=jnp.float32)
        return acc + b_ref[...]                                # bias (1, W*C)

    h = conv3x3(x2, band1_ref, b1_ref)
    h = _leaky_relu(h)
    h = conv3x3(h, band2_ref, b2_ref)

    # Channel attention: global-average-pool == column sum here; the 1/(H*W)
    # factor is pre-folded into wd_ref, and wu/bu are pre-tiled to (.., W*C)
    # so the sigmoid gate comes out already in the lane-dense layout.
    colsum = jnp.sum(h, axis=0, keepdims=True)                 # (1, W*C)
    y = jnp.dot(colsum, wd_ref[...],
                preferred_element_type=jnp.float32) + bd_ref[...]     # (1, C/r)
    y = _leaky_relu(y)
    gate = jax.nn.sigmoid(
        jnp.dot(y, wu_ref[...],
                preferred_element_type=jnp.float32) + bu_ref[...])    # (1, W*C)

    o_ref[...] = (h * gate + x2).astype(o_ref.dtype)           # lane-dense store


def _make_banded_conv_weights(w_hwio, W, C):
    """(3, 3, Cin, Cout) HWIO -> (3, W*C, W*C) block-banded matrices.

    band[dy, win*C + ci, w*C + co] = w_hwio[dy, dx, ci, co] with dx = win - w + 1;
    entries outside the band are zero, which also encodes the SAME zero padding
    along W (so the kernel never needs a W halo).
    """
    WC = W * C
    band = jnp.zeros((3, WC, WC), jnp.float32)
    for dx in range(3):
        for w in range(W):
            win = w + dx - 1
            if 0 <= win < W:
                band = band.at[:, win * C:(win + 1) * C,
                               w * C:(w + 1) * C].set(w_hwio[:, dx])
    return band


def rcab_forward(x_nchw, params):
    """x_nchw: (N, C, H, W) float32.  Returns (N, C, H, W)."""
    w1, b1, w2, b2, wd, bd, wu, bu = params
    N, C, H, W = x_nchw.shape
    Cr = wd.shape[1]
    WC = W * C

    # Lane-dense image layout: NCHW -> NHWC -> (N, H, W*C); W*C = 128 here.
    x = jnp.transpose(x_nchw, (0, 2, 3, 1)).reshape(N, H, WC)

    band1 = _make_banded_conv_weights(w1, W, C)                # (3, WC, WC)
    band2 = _make_banded_conv_weights(w2, W, C)
    b1t = jnp.tile(b1.reshape(1, C), (1, W))                   # (1, WC)
    b2t = jnp.tile(b2.reshape(1, C), (1, W))
    wd_t = jnp.tile(wd, (W, 1)) / float(H * W)                 # (WC, Cr), GAP folded in
    bd_r = bd.reshape(1, Cr)                                   # (1, Cr)
    wu_t = jnp.tile(wu, (1, W))                                # (Cr, WC)
    bu_t = jnp.tile(bu.reshape(1, C), (1, W))                  # (1, WC)

    flops = int(N * (2 * 3 * 2 * H * WC * WC + 2 * 2 * WC * Cr))
    bytes_accessed = int(4 * (2 * N * H * WC + 2 * 3 * WC * WC
                              + WC * Cr + Cr * WC + 3 * WC + Cr))
    cost = pl.CostEstimate(flops=flops, transcendentals=int(N * WC),
                           bytes_accessed=bytes_accessed)

    out = pl.pallas_call(
        rcab_kernel,
        out_shape=jax.ShapeDtypeStruct((N, H, WC), x.dtype),
        grid=(N,),
        in_specs=[
            pl.BlockSpec((None, H, WC), lambda n: (n, 0, 0)),  # x, one image / step
            # Weights/biases: constant index maps -> resident in VMEM, one DMA.
            pl.BlockSpec(band1.shape, lambda n: (0, 0, 0)),
            pl.BlockSpec(b1t.shape, lambda n: (0, 0)),
            pl.BlockSpec(band2.shape, lambda n: (0, 0, 0)),
            pl.BlockSpec(b2t.shape, lambda n: (0, 0)),
            pl.BlockSpec(wd_t.shape, lambda n: (0, 0)),
            pl.BlockSpec(bd_r.shape, lambda n: (0, 0)),
            pl.BlockSpec(wu_t.shape, lambda n: (0, 0)),
            pl.BlockSpec(bu_t.shape, lambda n: (0, 0)),
        ],
        out_specs=pl.BlockSpec((None, H, WC), lambda n: (n, 0, 0)),
        compiler_params=pltpu.CompilerParams(
            dimension_semantics=("parallel",)),  # one image per TC on v7x
        cost_estimate=cost,
    )(x, band1, b1t, band2, b2t, wd_t, bd_r, wu_t, bu_t)

    return jnp.transpose(out.reshape(N, H, W, C), (0, 3, 1, 2))


# ---------------- pure-JAX reference (for correctness check) ----------------
def rcab_ref(x_nchw, params):
    w1, b1, w2, b2, wd, bd, wu, bu = params
    x = jnp.transpose(x_nchw, (0, 2, 3, 1))                    # NHWC

    def conv3x3(h, w, b):  # w: (3,3,Cin,Cout) HWIO
        return jax.lax.conv_general_dilated(
            h, w, window_strides=(1, 1), padding="SAME",
            dimension_numbers=("NHWC", "HWIO", "NHWC")) + b.reshape(1, 1, 1, -1)

    h = conv3x3(x, w1, b1)
    h = jnp.where(h >= 0, h, 0.1 * h)
    h = conv3x3(h, w2, b2)
    y = jnp.mean(h, axis=(1, 2), keepdims=True)                # (N,1,1,C)
    y = jnp.einsum('nijc,cd->nijd', y, wd) + bd.reshape(1, 1, 1, -1)
    y = jnp.where(y >= 0, y, 0.1 * y)
    y = jax.nn.sigmoid(jnp.einsum('nijd,dc->nijc', y, wu) + bu.reshape(1, 1, 1, -1))
    out = h * y + x
    return jnp.transpose(out, (0, 3, 1, 2))                    # NCHW


if __name__ == "__main__":
    # RCAB(n_feat=8, reduction=4) on a 2 x 8 x 16 x 16 input  (W*C = 128 lanes).
    N, C, H, W = 2, 8, 16, 16
    Cr = C // 4

    key = jax.random.PRNGKey(0)
    ks = jax.random.split(key, 9)
    x = jax.random.normal(ks[0], (N, C, H, W), jnp.float32)

    # Synthetic parameters (HWIO for the 3x3 convs, (Cin, Cout) for the 1x1s).
    w1 = 0.1 * jax.random.normal(ks[1], (3, 3, C, C), jnp.float32)
    b1 = 0.1 * jax.random.normal(ks[2], (C,), jnp.float32)
    w2 = 0.1 * jax.random.normal(ks[3], (3, 3, C, C), jnp.float32)
    b2 = 0.1 * jax.random.normal(ks[4], (C,), jnp.float32)
    wd = 0.1 * jax.random.normal(ks[5], (C, Cr), jnp.float32)   # CA squeeze 1x1
    bd = 0.1 * jax.random.normal(ks[6], (Cr,), jnp.float32)
    wu = 0.1 * jax.random.normal(ks[7], (Cr, C), jnp.float32)   # CA excite 1x1
    bu = 0.1 * jax.random.normal(ks[8], (C,), jnp.float32)
    params = (w1, b1, w2, b2, wd, bd, wu, bu)

    out = jax.block_until_ready(rcab_forward(x, params))
    ref = jax.block_until_ready(rcab_ref(x, params))

    assert out.shape == (N, C, H, W) and out.dtype == jnp.float32
    err = float(jnp.max(jnp.abs(out - ref)))
    assert err < 1e-3, err

    print("KERNEL_OK")
</pallas_src>

<mosaic_0001>
module attributes {stable_mosaic.version = 11 : i64} {
  func.func @rcab_kernel(%arg0: i32, %arg1: memref<1x16x128xf32, #tpu.memory_space<vmem>>, %arg2: memref<3x128x128xf32, #tpu.memory_space<vmem>>, %arg3: memref<1x128xf32, #tpu.memory_space<vmem>>, %arg4: memref<3x128x128xf32, #tpu.memory_space<vmem>>, %arg5: memref<1x128xf32, #tpu.memory_space<vmem>>, %arg6: memref<128x2xf32, #tpu.memory_space<vmem>>, %arg7: memref<1x2xf32, #tpu.memory_space<vmem>>, %arg8: memref<2x128xf32, #tpu.memory_space<vmem>>, %arg9: memref<1x128xf32, #tpu.memory_space<vmem>>, %arg10: memref<1x16x128xf32, #tpu.memory_space<vmem>>) attributes {dimension_semantics = [#tpu.dimension_semantics<parallel>], iteration_bounds = array<i64: 2>, scalar_prefetch = 0 : i64, scratch_operands = 0 : i64, tpu.core_type = #tpu.core_type<tc>, window_params = [{transform_indices = @transform_0, window_bounds = array<i64: 1, 16, 128>}, {pipeline_mode = #tpu.pipeline_mode<synchronous>, transform_indices = @transform_1, window_bounds = array<i64: 3, 128, 128>}, {pipeline_mode = #tpu.pipeline_mode<synchronous>, transform_indices = @transform_2, window_bounds = array<i64: 1, 128>}, {pipeline_mode = #tpu.pipeline_mode<synchronous>, transform_indices = @transform_3, window_bounds = array<i64: 3, 128, 128>}, {pipeline_mode = #tpu.pipeline_mode<synchronous>, transform_indices = @transform_4, window_bounds = array<i64: 1, 128>}, {pipeline_mode = #tpu.pipeline_mode<synchronous>, transform_indices = @transform_5, window_bounds = array<i64: 128, 2>}, {pipeline_mode = #tpu.pipeline_mode<synchronous>, transform_indices = @transform_6, window_bounds = array<i64: 1, 2>}, {pipeline_mode = #tpu.pipeline_mode<synchronous>, transform_indices = @transform_7, window_bounds = array<i64: 2, 128>}, {pipeline_mode = #tpu.pipeline_mode<synchronous>, transform_indices = @transform_8, window_bounds = array<i64: 1, 128>}, {transform_indices = @transform_9, window_bounds = array<i64: 1, 16, 128>}]} {
    %c0 = arith.constant 0 : index
    %c0_0 = arith.constant 0 : index
    %c0_1 = arith.constant 0 : index
    %0 = vector.load %arg1[%c0, %c0_0, %c0_1] : memref<1x16x128xf32, #tpu.memory_space<vmem>>, vector<1x16x128xf32>
    %1 = vector.shape_cast %0 : vector<1x16x128xf32> to vector<16x128xf32>
    %cst = arith.constant 0.000000e+00 : f32
    %2 = vector.broadcast %cst : f32 to vector<1x128xf32>
    %3 = vector.extract_strided_slice %1 {offsets = [0, 0], sizes = [15, 128], strides = [1, 1]} : vector<16x128xf32> to vector<15x128xf32>
    %4 = tpu.concatenate %2, %3 in 0 : vector<1x128xf32>, vector<15x128xf32> -> vector<16x128xf32>
    %5 = vector.extract_strided_slice %1 {offsets = [1, 0], sizes = [15, 128], strides = [1, 1]} : vector<16x128xf32> to vector<15x128xf32>
    %6 = tpu.concatenate %5, %2 in 0 : vector<15x128xf32>, vector<1x128xf32> -> vector<16x128xf32>
    %c0_2 = arith.constant 0 : index
    %c0_3 = arith.constant 0 : index
    %c0_4 = arith.constant 0 : index
    %7 = vector.load %arg2[%c0_2, %c0_3, %c0_4] : memref<3x128x128xf32, #tpu.memory_space<vmem>>, vector<1x128x128xf32>
    %8 = vector.shape_cast %7 : vector<1x128x128xf32> to vector<128x128xf32>
    %cst_5 = arith.constant dense<0.000000e+00> : vector<16x128xf32>
    %9 = tpu.matmul %4, %8, %cst_5 {dimension_numbers = #tpu.dot_dimension_numbers<[1], [0], [0], [1], [0, 0, 1, 1], [], []>} : vector<16x128xf32>, vector<128x128xf32>, vector<16x128xf32> -> vector<16x128xf32>
    %c1 = arith.constant 1 : index
    %c0_6 = arith.constant 0 : index
    %c0_7 = arith.constant 0 : index
    %10 = vector.load %arg2[%c1, %c0_6, %c0_7] : memref<3x128x128xf32, #tpu.memory_space<vmem>>, vector<1x128x128xf32>
    %11 = vector.shape_cast %10 : vector<1x128x128xf32> to vector<128x128xf32>
    %cst_8 = arith.constant dense<0.000000e+00> : vector<16x128xf32>
    %12 = tpu.matmul %1, %11, %cst_8 {dimension_numbers = #tpu.dot_dimension_numbers<[1], [0], [0], [1], [0, 0, 1, 1], [], []>} : vector<16x128xf32>, vector<128x128xf32>, vector<16x128xf32> -> vector<16x128xf32>
    %13 = arith.addf %9, %12 : vector<16x128xf32>
    %c2 = arith.constant 2 : index
    %c0_9 = arith.constant 0 : index
    %c0_10 = arith.constant 0 : index
    %14 = vector.load %arg2[%c2, %c0_9, %c0_10] : memref<3x128x128xf32, #tpu.memory_space<vmem>>, vector<1x128x128xf32>
    %15 = vector.shape_cast %14 : vector<1x128x128xf32> to vector<128x128xf32>
    %cst_11 = arith.constant dense<0.000000e+00> : vector<16x128xf32>
    %16 = tpu.matmul %6, %15, %cst_11 {dimension_numbers = #tpu.dot_dimension_numbers<[1], [0], [0], [1], [0, 0, 1, 1], [], []>} : vector<16x128xf32>, vector<128x128xf32>, vector<16x128xf32> -> vector<16x128xf32>
    %17 = arith.addf %13, %16 : vector<16x128xf32>
    %c0_12 = arith.constant 0 : index
    %c0_13 = arith.constant 0 : index
    %18 = vector.load %arg3[%c0_12, %c0_13] : memref<1x128xf32, #tpu.memory_space<vmem>>, vector<1x128xf32>
    %19 = vector.broadcast %18 : vector<1x128xf32> to vector<16x128xf32>
    %20 = arith.addf %17, %19 : vector<16x128xf32>
    %cst_14 = arith.constant 0.000000e+00 : f32
    %21 = vector.broadcast %cst_14 : f32 to vector<16x128xf32>
    %22 = arith.cmpf oge, %20, %21 : vector<16x128xf32>
    %cst_15 = arith.constant 1.000000e-01 : f32
    %23 = vector.broadcast %cst_15 : f32 to vector<16x128xf32>
    %24 = arith.mulf %23, %20 : vector<16x128xf32>
    %25 = arith.select %22, %20, %24 : vector<16x128xi1>, vector<16x128xf32>
    %26 = vector.extract_strided_slice %25 {offsets = [0, 0], sizes = [15, 128], strides = [1, 1]} : vector<16x128xf32> to vector<15x128xf32>
    %27 = tpu.concatenate %2, %26 in 0 : vector<1x128xf32>, vector<15x128xf32> -> vector<16x128xf32>
    %28 = vector.extract_strided_slice %25 {offsets = [1, 0], sizes = [15, 128], strides = [1, 1]} : vector<16x128xf32> to vector<15x128xf32>
    %29 = tpu.concatenate %28, %2 in 0 : vector<15x128xf32>, vector<1x128xf32> -> vector<16x128xf32>
    %c0_16 = arith.constant 0 : index
    %c0_17 = arith.constant 0 : index
    %c0_18 = arith.constant 0 : index
    %30 = vector.load %arg4[%c0_16, %c0_17, %c0_18] : memref<3x128x128xf32, #tpu.memory_space<vmem>>, vector<1x128x128xf32>
    %31 = vector.shape_cast %30 : vector<1x128x128xf32> to vector<128x128xf32>
    %cst_19 = arith.constant dense<0.000000e+00> : vector<16x128xf32>
    %32 = tpu.matmul %27, %31, %cst_19 {dimension_numbers = #tpu.dot_dimension_numbers<[1], [0], [0], [1], [0, 0, 1, 1], [], []>} : vector<16x128xf32>, vector<128x128xf32>, vector<16x128xf32> -> vector<16x128xf32>
    %c1_20 = arith.constant 1 : index
    %c0_21 = arith.constant 0 : index
    %c0_22 = arith.constant 0 : index
    %33 = vector.load %arg4[%c1_20, %c0_21, %c0_22] : memref<3x128x128xf32, #tpu.memory_space<vmem>>, vector<1x128x128xf32>
    %34 = vector.shape_cast %33 : vector<1x128x128xf32> to vector<128x128xf32>
    %cst_23 = arith.constant dense<0.000000e+00> : vector<16x128xf32>
    %35 = tpu.matmul %25, %34, %cst_23 {dimension_numbers = #tpu.dot_dimension_numbers<[1], [0], [0], [1], [0, 0, 1, 1], [], []>} : vector<16x128xf32>, vector<128x128xf32>, vector<16x128xf32> -> vector<16x128xf32>
    %36 = arith.addf %32, %35 : vector<16x128xf32>
    %c2_24 = arith.constant 2 : index
    %c0_25 = arith.constant 0 : index
    %c0_26 = arith.constant 0 : index
    %37 = vector.load %arg4[%c2_24, %c0_25, %c0_26] : memref<3x128x128xf32, #tpu.memory_space<vmem>>, vector<1x128x128xf32>
    %38 = vector.shape_cast %37 : vector<1x128x128xf32> to vector<128x128xf32>
    %cst_27 = arith.constant dense<0.000000e+00> : vector<16x128xf32>
    %39 = tpu.matmul %29, %38, %cst_27 {dimension_numbers = #tpu.dot_dimension_numbers<[1], [0], [0], [1], [0, 0, 1, 1], [], []>} : vector<16x128xf32>, vector<128x128xf32>, vector<16x128xf32> -> vector<16x128xf32>
    %40 = arith.addf %36, %39 : vector<16x128xf32>
    %c0_28 = arith.constant 0 : index
    %c0_29 = arith.constant 0 : index
    %41 = vector.load %arg5[%c0_28, %c0_29] : memref<1x128xf32, #tpu.memory_space<vmem>>, vector<1x128xf32>
    %42 = vector.broadcast %41 : vector<1x128xf32> to vector<16x128xf32>
    %43 = arith.addf %40, %42 : vector<16x128xf32>
    %cst_30 = arith.constant dense<0.000000e+00> : vector<128xf32>
    %44 = vector.multi_reduction <add>, %43, %cst_30 [0] : vector<16x128xf32> to vector<128xf32>
    %45 = vector.shape_cast %44 : vector<128xf32> to vector<1x128xf32>
    %c0_31 = arith.constant 0 : index
    %c0_32 = arith.constant 0 : index
    %46 = vector.load %arg6[%c0_31, %c0_32] : memref<128x2xf32, #tpu.memory_space<vmem>>, vector<128x2xf32>
    %cst_33 = arith.constant dense<0.000000e+00> : vector<1x2xf32>
    %47 = tpu.matmul %45, %46, %cst_33 {dimension_numbers = #tpu.dot_dimension_numbers<[1], [0], [0], [1], [0, 0, 1, 1], [], []>} : vector<1x128xf32>, vector<128x2xf32>, vector<1x2xf32> -> vector<1x2xf32>
    %c0_34 = arith.constant 0 : index
    %c0_35 = arith.constant 0 : index
    %48 = vector.load %arg7[%c0_34, %c0_35] : memref<1x2xf32, #tpu.memory_space<vmem>>, vector<1x2xf32>
    %49 = arith.addf %47, %48 : vector<1x2xf32>
    %cst_36 = arith.constant 0.000000e+00 : f32
    %50 = vector.broadcast %cst_36 : f32 to vector<1x2xf32>
    %51 = arith.cmpf oge, %49, %50 : vector<1x2xf32>
    %cst_37 = arith.constant 1.000000e-01 : f32
    %52 = vector.broadcast %cst_37 : f32 to vector<1x2xf32>
    %53 = arith.mulf %52, %49 : vector<1x2xf32>
    %54 = arith.select %51, %49, %53 : vector<1x2xi1>, vector<1x2xf32>
    %c0_38 = arith.constant 0 : index
    %c0_39 = arith.constant 0 : index
    %55 = vector.load %arg8[%c0_38, %c0_39] : memref<2x128xf32, #tpu.memory_space<vmem>>, vector<2x128xf32>
    %cst_40 = arith.constant dense<0.000000e+00> : vector<1x128xf32>
    %56 = tpu.matmul %54, %55, %cst_40 {dimension_numbers = #tpu.dot_dimension_numbers<[1], [0], [0], [1], [0, 0, 1, 1], [], []>} : vector<1x2xf32>, vector<2x128xf32>, vector<1x128xf32> -> vector<1x128xf32>
    %c0_41 = arith.constant 0 : index
    %c0_42 = arith.constant 0 : index
    %57 = vector.load %arg9[%c0_41, %c0_42] : memref<1x128xf32, #tpu.memory_space<vmem>>, vector<1x128xf32>
    %58 = arith.addf %56, %57 : vector<1x128xf32>
    %59 = arith.negf %58 : vector<1x128xf32>
    %60 = math.exp %59 : vector<1x128xf32>
    %cst_43 = arith.constant 1.000000e+00 : f32
    %61 = vector.broadcast %cst_43 : f32 to vector<1x128xf32>
    %62 = arith.addf %61, %60 : vector<1x128xf32>
    %63 = arith.divf %61, %62 : vector<1x128xf32>
    %64 = vector.broadcast %63 : vector<1x128xf32> to vector<16x128xf32>
    %65 = arith.mulf %43, %64 : vector<16x128xf32>
    %66 = arith.addf %65, %1 : vector<16x128xf32>
    %c0_44 = arith.constant 0 : index
    %c0_45 = arith.constant 0 : index
    %c0_46 = arith.constant 0 : index
    %67 = vector.load %arg10[%c0_44, %c0_45, %c0_46] : memref<1x16x128xf32, #tpu.memory_space<vmem>>, vector<1x16x128xf32>
    %68 = vector.shape_cast %67 : vector<1x16x128xf32> to vector<16x128xf32>
    %69 = vector.shape_cast %66 : vector<16x128xf32> to vector<1x16x128xf32>
    tpu.vector_store %arg10[%c0_44, %c0_45, %c0_46], %69 {strides = array<i32>} : memref<1x16x128xf32, #tpu.memory_space<vmem>>, vector<1x16x128xf32>,
    return
  }
  func.func @transform_0(%arg0: i32) -> (i32, i32, i32) {
    %c0_i32 = arith.constant 0 : i32
    %c0_i32_0 = arith.constant 0 : i32
    %c0_i32_1 = arith.constant 0 : i32
    return %arg0, %c0_i32, %c0_i32_0 : i32, i32, i32
  }
  func.func @transform_1(%arg0: i32) -> (i32, i32, i32) {
    %c0_i32 = arith.constant 0 : i32
    %c0_i32_0 = arith.constant 0 : i32
    %c0_i32_1 = arith.constant 0 : i32
    %c0_i32_2 = arith.constant 0 : i32
    return %c0_i32, %c0_i32_0, %c0_i32_1 : i32, i32, i32
  }
  func.func @transform_2(%arg0: i32) -> (i32, i32) {
    %c0_i32 = arith.constant 0 : i32
    %c0_i32_0 = arith.constant 0 : i32
    %c0_i32_1 = arith.constant 0 : i32
    return %c0_i32, %c0_i32_0 : i32, i32
  }
  func.func @transform_3(%arg0: i32) -> (i32, i32, i32) {
    %c0_i32 = arith.constant 0 : i32
    %c0_i32_0 = arith.constant 0 : i32
    %c0_i32_1 = arith.constant 0 : i32
    %c0_i32_2 = arith.constant 0 : i32
    return %c0_i32, %c0_i32_0, %c0_i32_1 : i32, i32, i32
  }
  func.func @transform_4(%arg0: i32) -> (i32, i32) {
    %c0_i32 = arith.constant 0 : i32
    %c0_i32_0 = arith.constant 0 : i32
    %c0_i32_1 = arith.constant 0 : i32
    return %c0_i32, %c0_i32_0 : i32, i32
  }
  func.func @transform_5(%arg0: i32) -> (i32, i32) {
    %c0_i32 = arith.constant 0 : i32
    %c0_i32_0 = arith.constant 0 : i32
    %c0_i32_1 = arith.constant 0 : i32
    return %c0_i32, %c0_i32_0 : i32, i32
  }
  func.func @transform_6(%arg0: i32) -> (i32, i32) {
    %c0_i32 = arith.constant 0 : i32
    %c0_i32_0 = arith.constant 0 : i32
    %c0_i32_1 = arith.constant 0 : i32
    return %c0_i32, %c0_i32_0 : i32, i32
  }
  func.func @transform_7(%arg0: i32) -> (i32, i32) {
    %c0_i32 = arith.constant 0 : i32
    %c0_i32_0 = arith.constant 0 : i32
    %c0_i32_1 = arith.constant 0 : i32
    return %c0_i32, %c0_i32_0 : i32, i32
  }
  func.func @transform_8(%arg0: i32) -> (i32, i32) {
    %c0_i32 = arith.constant 0 : i32
    %c0_i32_0 = arith.constant 0 : i32
    %c0_i32_1 = arith.constant 0 : i32
    return %c0_i32, %c0_i32_0 : i32, i32
  }
  func.func @transform_9(%arg0: i32) -> (i32, i32, i32) {
    %c0_i32 = arith.constant 0 : i32
    %c0_i32_0 = arith.constant 0 : i32
    %c0_i32_1 = arith.constant 0 : i32
    return %arg0, %c0_i32, %c0_i32_0 : i32, i32, i32
  }
}

</mosaic_0001>

<llo_original>
// kernel: tpu_custom_call.1
$region0: #{tpu_custom_call.1}
  #allocation0 [shape = 'u32[]', space=smem, size = 0x4, offset = 0x4, fixed_abs, tag = 'smem constant byte address 0x4 - core index']
  #allocation1 [shape = 'u32[72,128]{1,0:T(1,128)}', space=vmem, size = 0x9000, scoped, tag = 'internal scratch']
  %s0 = inlined_call_operand.vmem [shape: f32[2,16,128], index: 0, kind: input, shape index: {}]
  %s1 = inlined_call_operand.hbm [shape: f32[3,128,128], index: 1, kind: input, shape index: {}]
  %s2 = inlined_call_operand.vmem [shape: f32[1,128], index: 2, kind: input, shape index: {}]
  %s3 = inlined_call_operand.hbm [shape: f32[3,128,128], index: 3, kind: input, shape index: {}]
  %s4 = inlined_call_operand.vmem [shape: f32[1,128], index: 4, kind: input, shape index: {}]
  %s5 = inlined_call_operand.vmem [shape: f32[128,2], index: 5, kind: input, shape index: {}]
  %s6 = inlined_call_operand.vmem [shape: f32[1,2], index: 6, kind: input, shape index: {}]
  %s7 = inlined_call_operand.vmem [shape: f32[2,128], index: 7, kind: input, shape index: {}]
  %s8 = inlined_call_operand.vmem [shape: f32[1,128], index: 8, kind: input, shape index: {}]
  %s9 = inlined_call_operand.hbm [shape: f32[2,16,128], index: 9, kind: output, shape index: {}]
  %s10 = sld [smem:[#allocation0]]
  $region77: #{tpu_custom_call.1} parent=0
    _
  %s12 = ssub.s32 1, %s10
  %s13 = scalar_select 0, %s12, %s10
  $region1: #{tpu_custom_call.1} parent=0
    #allocation2 [shape = 'u8[196608]{0}', space=vmem, size = 0x30000, scoped, tag = 'input window, operand 1, single buffered']
    #allocation3 [shape = 's32[2]{0}', space=sflag, size = 0x8, scoped, tag = 'scoped memory for tpu_custom_call.1']
    #allocation4 [shape = 's32[2]{0}', space=sflag, size = 0x8, scoped, tag = 'scoped memory for tpu_custom_call.1']
    #allocation5 [shape = 'u8[196608]{0}', space=vmem, size = 0x30000, scoped, tag = 'input window, operand 3, single buffered']
    #allocation6 [shape = 's32[1]{0}', space=sflag, size = 0x4, scoped, tag = 'scoped memory for tpu_custom_call.1']
    #allocation7 [shape = 'u8[16384]{0}', space=vmem, size = 0x4000, scoped, tag = 'output window, operand 0']
    %14 = vsyncpa [#allocation3], 0
    %15 = vsyncpa [#allocation6], 0
    %16 = vsyncpa [#allocation4], 0
    %s17 = scalar_lea.sflag [#allocation4], 1
    %18 = vsyncpa %s17, 0
    loop: start=0, step=1, limit=4
    $region2: #{tpu_custom_call.1} parent=1 // loop_pre_header
      _
    $region3: #{tpu_custom_call.1} parent=1 // loop_header
      %s20 = sphi 0, %s24
      %p21 = scmp.ge.s32.totalorder %s20, 4
      %s30 = sphi 0, %s32
      %s33 = sphi 0, %s30
      %s34 = sphi 0, %s33
      %s50 = sphi 0, %s34
      %s54 = sphi 0, %s54
      %s56 = sphi 0, %s54
      %s57 = sphi 0, %s56
      %s71 = sphi 0, %s57
      %s75 = sphi 0, %s75
      %s77 = sphi 0, %s75
      %s78 = sphi 0, %s77
      %s92 = sphi 0, %s78
      %s96 = sphi 0, %s96
      %s98 = sphi 0, %s96
      %s99 = sphi 0, %s98
      %s113 = sphi 0, %s99
      %s117 = sphi 0, %s117
      %s119 = sphi 0, %s117
      %s120 = sphi 0, %s119
      %s134 = sphi 0, %s120
      %s138 = sphi 0, %s138
      %s140 = sphi 0, %s138
      %s141 = sphi 0, %s140
      %s155 = sphi 0, %s141
      %s159 = sphi 0, %s159
      %s161 = sphi 0, %s159
      %s162 = sphi 0, %s161
      %s176 = sphi 0, %s162
      %s180 = sphi 0, %s180
      %s182 = sphi 0, %s180
      %s183 = sphi 0, %s182
      %s197 = sphi 0, %s183
      %s201 = sphi 0, %s201
      %s203 = sphi 0, %s201
      %s204 = sphi 0, %s203
      %s218 = sphi 0, %s204
      %s224 = sphi 0, %s226
      %s227 = sphi 0, %s224
      %s228 = sphi 0, %s227
      %s244 = sphi 0, %s228
    $region4: #{tpu_custom_call.1} parent=1 // loop_header_branch
      %23 = sbr.rel (%p21) target = $region8
    $region5: #{tpu_custom_call.1} parent=1 // loop_body
      %s25 = ssub.s32 %s20, 1
      %s26 = ssub.s32 %s20, 2
      %s27 = sadd.s32 %s20, 1
      %s28 = ssub.s32 %s20, %s27
      %p29 = scmp.eq.s32.totalorder %s28, 0
      %s31 = sadd.s32 %s30, 1
      %s32 = scalar_select %p29, %s30, %s31
      %p35 = pneg %p29
      %p36 = scmp.eq.s32.totalorder %s20, 1
      %p37 = por %p35, %p36
      %p38 = scmp.ne.s32.totalorder %s30, %s33
      %p39 = scmp.eq.s32.totalorder %s20, 0
      %p40 = por %p38, %p39
      %p41 = scmp.ne.s32.totalorder %s30, %s33
      %p42 = scmp.eq.s32.totalorder %s25, 1
      %p43 = por %p41, %p42
      %p44 = scmp.ne.s32.totalorder %s33, %s34
      %p45 = scmp.eq.s32.totalorder %s25, 0
      %p46 = por %p44, %p45
      %p47 = scmp.ne.s32.totalorder %s33, %s34
      %p48 = scmp.eq.s32.totalorder %s26, 1
      %p49 = por %p47, %p48
      %p51 = scmp.ne.s32.totalorder %s34, %s50
      %p52 = scmp.eq.s32.totalorder %s26, 0
      %p53 = por %p51, %p52
      %s55 = sadd.s32 %s54, 1
      %p58 = scmp.eq.s32.totalorder %s20, 1
      %p59 = scmp.ne.s32.totalorder %s54, %s56
      %p60 = scmp.eq.s32.totalorder %s20, 0
      %p61 = por %p59, %p60
      %p62 = scmp.ne.s32.totalorder %s54, %s56
      %p63 = scmp.eq.s32.totalorder %s25, 1
      %p64 = por %p62, %p63
      %p65 = scmp.ne.s32.totalorder %s56, %s57
      %p66 = scmp.eq.s32.totalorder %s25, 0
      %p67 = por %p65, %p66
      %p68 = scmp.ne.s32.totalorder %s56, %s57
      %p69 = scmp.eq.s32.totalorder %s26, 1
      %p70 = por %p68, %p69
      %p72 = scmp.ne.s32.totalorder %s57, %s71
      %p73 = scmp.eq.s32.totalorder %s26, 0
      %p74 = por %p72, %p73
      %s76 = sadd.s32 %s75, 1
      %p79 = scmp.eq.s32.totalorder %s20, 1
      %p80 = scmp.ne.s32.totalorder %s75, %s77
      %p81 = scmp.eq.s32.totalorder %s20, 0
      %p82 = por %p80, %p81
      %p83 = scmp.ne.s32.totalorder %s75, %s77
      %p84 = scmp.eq.s32.totalorder %s25, 1
      %p85 = por %p83, %p84
      %p86 = scmp.ne.s32.totalorder %s77, %s78
      %p87 = scmp.eq.s32.totalorder %s25, 0
      %p88 = por %p86, %p87
      %p89 = scmp.ne.s32.totalorder %s77, %s78
      %p90 = scmp.eq.s32.totalorder %s26, 1
      %p91 = por %p89, %p90
      %p93 = scmp.ne.s32.totalorder %s78, %s92
      %p94 = scmp.eq.s32.totalorder %s26, 0
      %p95 = por %p93, %p94
      %s97 = sadd.s32 %s96, 1
      %p100 = scmp.eq.s32.totalorder %s20, 1
      %p101 = scmp.ne.s32.totalorder %s96, %s98
      %p102 = scmp.eq.s32.totalorder %s20, 0
      %p103 = por %p101, %p102
      %p104 = scmp.ne.s32.totalorder %s96, %s98
      %p105 = scmp.eq.s32.totalorder %s25, 1
      %p106 = por %p104, %p105
      %p107 = scmp.ne.s32.totalorder %s98, %s99
      %p108 = scmp.eq.s32.totalorder %s25, 0
      %p109 = por %p107, %p108
      %p110 = scmp.ne.s32.totalorder %s98, %s99
      %p111 = scmp.eq.s32.totalorder %s26, 1
      %p112 = por %p110, %p111
      %p114 = scmp.ne.s32.totalorder %s99, %s113
      %p115 = scmp.eq.s32.totalorder %s26, 0
      %p116 = por %p114, %p115
      %s118 = sadd.s32 %s117, 1
      %p121 = scmp.eq.s32.totalorder %s20, 1
      %p122 = scmp.ne.s32.totalorder %s117, %s119
      %p123 = scmp.eq.s32.totalorder %s20, 0
      %p124 = por %p122, %p123
      %p125 = scmp.ne.s32.totalorder %s117, %s119
      %p126 = scmp.eq.s32.totalorder %s25, 1
      %p127 = por %p125, %p126
      %p128 = scmp.ne.s32.totalorder %s119, %s120
      %p129 = scmp.eq.s32.totalorder %s25, 0
      %p130 = por %p128, %p129
      %p131 = scmp.ne.s32.totalorder %s119, %s120
      %p132 = scmp.eq.s32.totalorder %s26, 1
      %p133 = por %p131, %p132
      %p135 = scmp.ne.s32.totalorder %s120, %s134
      %p136 = scmp.eq.s32.totalorder %s26, 0
      %p137 = por %p135, %p136
      %s139 = sadd.s32 %s138, 1
      %p142 = scmp.eq.s32.totalorder %s20, 1
      %p143 = scmp.ne.s32.totalorder %s138, %s140
      %p144 = scmp.eq.s32.totalorder %s20, 0
      %p145 = por %p143, %p144
      %p146 = scmp.ne.s32.totalorder %s138, %s140
      %p147 = scmp.eq.s32.totalorder %s25, 1
      %p148 = por %p146, %p147
      %p149 = scmp.ne.s32.totalorder %s140, %s141
      %p150 = scmp.eq.s32.totalorder %s25, 0
      %p151 = por %p149, %p150
      %p152 = scmp.ne.s32.totalorder %s140, %s141
      %p153 = scmp.eq.s32.totalorder %s26, 1
      %p154 = por %p152, %p153
      %p156 = scmp.ne.s32.totalorder %s141, %s155
      %p157 = scmp.eq.s32.totalorder %s26, 0
      %p158 = por %p156, %p157
      %s160 = sadd.s32 %s159, 1
      %p163 = scmp.eq.s32.totalorder %s20, 1
      %p164 = scmp.ne.s32.totalorder %s159, %s161
      %p165 = scmp.eq.s32.totalorder %s20, 0
      %p166 = por %p164, %p165
      %p167 = scmp.ne.s32.totalorder %s159, %s161
      %p168 = scmp.eq.s32.totalorder %s25, 1
      %p169 = por %p167, %p168
      %p170 = scmp.ne.s32.totalorder %s161, %s162
      %p171 = scmp.eq.s32.totalorder %s25, 0
      %p172 = por %p170, %p171
      %p173 = scmp.ne.s32.totalorder %s161, %s162
      %p174 = scmp.eq.s32.totalorder %s26, 1
      %p175 = por %p173, %p174
      %p177 = scmp.ne.s32.totalorder %s162, %s176
      %p178 = scmp.eq.s32.totalorder %s26, 0
      %p179 = por %p177, %p178
      %s181 = sadd.s32 %s180, 1
      %p184 = scmp.eq.s32.totalorder %s20, 1
      %p185 = scmp.ne.s32.totalorder %s180, %s182
      %p186 = scmp.eq.s32.totalorder %s20, 0
      %p187 = por %p185, %p186
      %p188 = scmp.ne.s32.totalorder %s180, %s182
      %p189 = scmp.eq.s32.totalorder %s25, 1
      %p190 = por %p188, %p189
      %p191 = scmp.ne.s32.totalorder %s182, %s183
      %p192 = scmp.eq.s32.totalorder %s25, 0
      %p193 = por %p191, %p192
      %p194 = scmp.ne.s32.totalorder %s182, %s183
      %p195 = scmp.eq.s32.totalorder %s26, 1
      %p196 = por %p194, %p195
      %p198 = scmp.ne.s32.totalorder %s183, %s197
      %p199 = scmp.eq.s32.totalorder %s26, 0
      %p200 = por %p198, %p199
      %s202 = sadd.s32 %s201, 1
      %p205 = scmp.eq.s32.totalorder %s20, 1
      %p206 = scmp.ne.s32.totalorder %s201, %s203
      %p207 = scmp.eq.s32.totalorder %s20, 0
      %p208 = por %p206, %p207
      %p209 = scmp.ne.s32.totalorder %s201, %s203
      %p210 = scmp.eq.s32.totalorder %s25, 1
      %p211 = por %p209, %p210
      %p212 = scmp.ne.s32.totalorder %s203, %s204
      %p213 = scmp.eq.s32.totalorder %s25, 0
      %p214 = por %p212, %p213
      %p215 = scmp.ne.s32.totalorder %s203, %s204
      %p216 = scmp.eq.s32.totalorder %s26, 1
      %p217 = por %p215, %p216
      %p219 = scmp.ne.s32.totalorder %s204, %s218
      %p220 = scmp.eq.s32.totalorder %s26, 0
      %p221 = por %p219, %p220
      %s222 = ssub.s32 %s20, %s27
      %p223 = scmp.eq.s32.totalorder %s222, 0
      %s225 = sadd.s32 %s224, 1
      %s226 = scalar_select %p223, %s224, %s225
      %p229 = pneg %p223
      %p230 = scmp.eq.s32.totalorder %s20, 1
      %p231 = por %p229, %p230
      %p232 = scmp.ne.s32.totalorder %s224, %s227
      %p233 = scmp.eq.s32.totalorder %s20, 0
      %p234 = por %p232, %p233
      %p235 = scmp.ne.s32.totalorder %s224, %s227
      %p236 = scmp.eq.s32.totalorder %s25, 1
      %p237 = por %p235, %p236
      %p238 = scmp.ne.s32.totalorder %s227, %s228
      %p239 = scmp.eq.s32.totalorder %s25, 0
      %p240 = por %p238, %p239
      %p241 = scmp.ne.s32.totalorder %s227, %s228
      %p242 = scmp.eq.s32.totalorder %s26, 1
      %p243 = por %p241, %p242
      %p245 = scmp.ne.s32.totalorder %s228, %s244
      %p246 = scmp.eq.s32.totalorder %s26, 0
      %p247 = por %p245, %p246
      %p248 = scmp.le.s32.totalorder 1, %s20
      %p249 = scmp.lt.s32.totalorder %s20, 3
      %p250 = pnand %p248, %p249
      %p251 = pneg %p250
      // Predicated region
      $region9: #{tpu_custom_call.1} parent=5 // pred_check
        _
      $region10: #{tpu_custom_call.1} parent=5 // pred_check_branch
        %253 = sbr.rel (%p250) target = $region12
      $region11: #{tpu_custom_call.1} parent=5 // pred_region
        %s254 = ssub.s32 %s20, 1
        // Predicated region
        $region13: #{tpu_custom_call.1} parent=11 // pred_check
          %p255 = pneg %p67
        $region14: #{tpu_custom_call.1} parent=11 // pred_check_branch
          %257 = sbr.rel (%p255) target = $region16
        $region15: #{tpu_custom_call.1} parent=11 // pred_region
          %259 = vsyncadd [#allocation3], 0
          %s260 = sshll.u32 %s1, 4
          %s261 = int_to_ptr.hbm [resolvable:$true] %s260
          %s262 = sshll.u32 [#allocation2], 4
          %s263 = int_to_ptr.vmem [resolvable:$true] %s262
          %268 = dma.hbm_to_vmem [thread:$0]  %s261, 6144, %s263, [#allocation3], 128, 128, 8
        $region16: #{tpu_custom_call.1} parent=11 // pred_fallthru
          _
        // Predicated region
        $region17: #{tpu_custom_call.1} parent=11 // pred_check
          %p269 = pneg %p88
        $region18: #{tpu_custom_call.1} parent=11 // pred_check_branch
          %271 = sbr.rel (%p269) target = $region20
        $region19: #{tpu_custom_call.1} parent=11 // pred_region
          _
        $region20: #{tpu_custom_call.1} parent=11 // pred_fallthru
          _
        // Predicated region
        $region21: #{tpu_custom_call.1} parent=11 // pred_check
          %p272 = pneg %p109
        $region22: #{tpu_custom_call.1} parent=11 // pred_check_branch
          %274 = sbr.rel (%p272) target = $region24
        $region23: #{tpu_custom_call.1} parent=11 // pred_region
          %276 = vsyncadd [#allocation6], 0
          %s277 = sshll.u32 %s3, 4
          %s278 = int_to_ptr.hbm [resolvable:$true] %s277
          %s279 = sshll.u32 [#allocation5], 4
          %s280 = int_to_ptr.vmem [resolvable:$true] %s279
          %285 = dma.hbm_to_vmem [thread:$0]  %s278, 6144, %s280, [#allocation6], 128, 128, 8
        $region24: #{tpu_custom_call.1} parent=11 // pred_fallthru
          _
        // Predicated region
        $region25: #{tpu_custom_call.1} parent=11 // pred_check
          %p286 = pneg %p130
        $region26: #{tpu_custom_call.1} parent=11 // pred_check_branch
          %288 = sbr.rel (%p286) target = $region28
        $region27: #{tpu_custom_call.1} parent=11 // pred_region
          _
        $region28: #{tpu_custom_call.1} parent=11 // pred_fallthru
          _
        // Predicated region
        $region29: #{tpu_custom_call.1} parent=11 // pred_check
          %p289 = pneg %p151
        $region30: #{tpu_custom_call.1} parent=11 // pred_check_branch
          %291 = sbr.rel (%p289) target = $region32
        $region31: #{tpu_custom_call.1} parent=11 // pred_region
          _
        $region32: #{tpu_custom_call.1} parent=11 // pred_fallthru
          _
        // Predicated region
        $region33: #{tpu_custom_call.1} parent=11 // pred_check
          %p292 = pneg %p172
        $region34: #{tpu_custom_call.1} parent=11 // pred_check_branch
          %294 = sbr.rel (%p292) target = $region36
        $region35: #{tpu_custom_call.1} parent=11 // pred_region
          _
        $region36: #{tpu_custom_call.1} parent=11 // pred_fallthru
          _
        // Predicated region
        $region37: #{tpu_custom_call.1} parent=11 // pred_check
          %p295 = pneg %p193
        $region38: #{tpu_custom_call.1} parent=11 // pred_check_branch
          %297 = sbr.rel (%p295) target = $region40
        $region39: #{tpu_custom_call.1} parent=11 // pred_region
          _
        $region40: #{tpu_custom_call.1} parent=11 // pred_fallthru
          _
        // Predicated region
        $region41: #{tpu_custom_call.1} parent=11 // pred_check
          %p298 = pneg %p214
        $region42: #{tpu_custom_call.1} parent=11 // pred_check_branch
          %300 = sbr.rel (%p298) target = $region44
        $region43: #{tpu_custom_call.1} parent=11 // pred_region
          _
        $region44: #{tpu_custom_call.1} parent=11 // pred_fallthru
          _
      $region12: #{tpu_custom_call.1} parent=5 // pred_fallthru
        _
      %p301 = scmp.lt.s32.totalorder %s20, 2
      // Predicated region
      $region45: #{tpu_custom_call.1} parent=5 // pred_check
        %p302 = pneg %p301
      $region46: #{tpu_custom_call.1} parent=5 // pred_check_branch
        %304 = sbr.rel (%p302) target = $region48
      $region47: #{tpu_custom_call.1} parent=5 // pred_region
        // Predicated region
        $region49: #{tpu_custom_call.1} parent=47 // pred_check
          %p305 = pneg %p40
        $region50: #{tpu_custom_call.1} parent=47 // pred_check_branch
          %307 = sbr.rel (%p305) target = $region52
        $region51: #{tpu_custom_call.1} parent=47 // pred_region
          %p308 = scmp.lt.s32.totalorder %s20, 1
          %s309 = scalar_select %p308, %s20, 1
          %s310 = smul.addr %s309, 2
          %s311 = smul.addr %s310, 8
          %s312 = scalar_lea.vmem %s0, %s311
        $region52: #{tpu_custom_call.1} parent=47 // pred_fallthru
          _
      $region48: #{tpu_custom_call.1} parent=5 // pred_fallthru
        _
      %p313 = scmp.le.s32.totalorder 1, %s20
      %p314 = scmp.lt.s32.totalorder %s20, 3
      %p315 = pnand %p313, %p314
      %p316 = pneg %p315
      // Predicated region
      $region53: #{tpu_custom_call.1} parent=5 // pred_check
        _
      $region54: #{tpu_custom_call.1} parent=5 // pred_check_branch
        %318 = sbr.rel (%p315) target = $region56
      $region55: #{tpu_custom_call.1} parent=5 // pred_region
        %s319 = ssub.s32 %s20, 1
        // Predicated region
        $region57: #{tpu_custom_call.1} parent=55 // pred_check
          %p320 = pneg %p67
        $region58: #{tpu_custom_call.1} parent=55 // pred_check_branch
          %322 = sbr.rel (%p320) target = $region60
        $region59: #{tpu_custom_call.1} parent=55 // pred_region
          %324 = dma.done [#allocation3], 6144
        $region60: #{tpu_custom_call.1} parent=55 // pred_fallthru
          _
        // Predicated region
        $region61: #{tpu_custom_call.1} parent=55 // pred_check
          %p325 = pneg %p109
        $region62: #{tpu_custom_call.1} parent=55 // pred_check_branch
          %327 = sbr.rel (%p325) target = $region64
        $region63: #{tpu_custom_call.1} parent=55 // pred_region
          %329 = dma.done [#allocation6], 6144
        $region64: #{tpu_custom_call.1} parent=55 // pred_fallthru
          _
        %p330 = scmp.lt.s32.totalorder %s25, 1
        %s331 = scalar_select %p330, %s25, 1
        %s332 = smul.addr %s331, 2
        %s333 = smul.addr %s332, 8
        %s334 = scalar_lea.vmem %s0, %s333
        %p335 = pneg %p46
        %p336 = pneg %p43
        %p337 = pneg %p67
        %p338 = pneg %p64
        %p339 = pneg %p88
        %p340 = pneg %p85
        %p341 = pneg %p109
        %p342 = pneg %p106
        %p343 = pneg %p130
        %p344 = pneg %p127
        %p345 = pneg %p151
        %p346 = pneg %p148
        %p347 = pneg %p172
        %p348 = pneg %p169
        %p349 = pneg %p193
        %p350 = pneg %p190
        %p351 = pneg %p214
        %p352 = pneg %p211
        %p353 = pneg %p240
        %p354 = pneg %p237
        %s355 = sand.u32 %s227, 1
        %s356 = scalar_lea.sflag [#allocation4], %s355
        %s357 = sand.u32 %s227, 1
        %s358 = smul.addr %s357, 16
        %s359 = scalar_lea.vmem [#allocation7], %s358
        %p360 = scmp.lt.s32.totalorder %s25, 1
        %s361 = scalar_select %p360, %s25, 1
        %s362 = smul.addr %s361, 2
        %s363 = smul.addr %s362, 8
        %s364 = scalar_lea.vmem %s0, %s363
        %v365 = vld [vmem:[%s364] sm:$0xff]
        %v366 = vld [vmem:[%s364 + $0x8] sm:$0xff]
        %vm369 = vcmask 1040384
        %v370 = vrot.slane %v365, 7
        %v371 = vrot.slane %v366, 7
        %v372 = vsel %vm369, %v370, %v371
        %v375 = vsel %vm369, 0.0, %v370
        %vm376 = vcmask 1046528
        %v377 = vrot.slane %v365, 1
        %v378 = vrot.slane %v366, 1
        %v379 = vsel %vm376, %v377, %v378
        %v382 = vsel %vm376, %v378, 0.0
        %v383 = vld [vmem:[#allocation2] sm:$0xff]
        %v384 = vld [vmem:[#allocation2 + $0x8] sm:$0xff]
        %v385 = vld [vmem:[#allocation2 + $0x10] sm:$0xff]
        %v386 = vld [vmem:[#allocation2 + $0x18] sm:$0xff]
        %v387 = vld [vmem:[#allocation2 + $0x20] sm:$0xff]
        %v388 = vld [vmem:[#allocation2 + $0x28] sm:$0xff]
        %v389 = vld [vmem:[#allocation2 + $0x30] sm:$0xff]
        %v390 = vld [vmem:[#allocation2 + $0x38] sm:$0xff]
        %v391 = vld [vmem:[#allocation2 + $0x40] sm:$0xff]
        %v392 = vld [vmem:[#allocation2 + $0x48] sm:$0xff]
        %v393 = vld [vmem:[#allocation2 + $0x50] sm:$0xff]
        %v394 = vld [vmem:[#allocation2 + $0x58] sm:$0xff]
        %v395 = vld [vmem:[#allocation2 + $0x60] sm:$0xff]
        %v396 = vld [vmem:[#allocation2 + $0x68] sm:$0xff]
        %v397 = vld [vmem:[#allocation2 + $0x70] sm:$0xff]
        %v398 = vld [vmem:[#allocation2 + $0x78] sm:$0xff]
        %s399 = scalar_lea.vmem [#allocation2], 128
        %v400 = vld [vmem:[%s399] sm:$0xff]
        %v401 = vld [vmem:[%s399 + $0x8] sm:$0xff]
        %v402 = vld [vmem:[%s399 + $0x10] sm:$0xff]
        %v403 = vld [vmem:[%s399 + $0x18] sm:$0xff]
        %v404 = vld [vmem:[%s399 + $0x20] sm:$0xff]
        %v405 = vld [vmem:[%s399 + $0x28] sm:$0xff]
        %v406 = vld [vmem:[%s399 + $0x30] sm:$0xff]
        %v407 = vld [vmem:[%s399 + $0x38] sm:$0xff]
        %v408 = vld [vmem:[%s399 + $0x40] sm:$0xff]
        %v409 = vld [vmem:[%s399 + $0x48] sm:$0xff]
        %v410 = vld [vmem:[%s399 + $0x50] sm:$0xff]
        %v411 = vld [vmem:[%s399 + $0x58] sm:$0xff]
        %v412 = vld [vmem:[%s399 + $0x60] sm:$0xff]
        %v413 = vld [vmem:[%s399 + $0x68] sm:$0xff]
        %v414 = vld [vmem:[%s399 + $0x70] sm:$0xff]
        %v415 = vld [vmem:[%s399 + $0x78] sm:$0xff]
        %416 = vmatpush.msra.mxu0 %v415
        %417 = vmatpush.msra.mxu0 %v414
        %418 = vmatpush.msra.mxu0 %v413
        %419 = vmatpush.msra.mxu0 %v412
        %420 = vmatpush.msra.mxu0 %v411
        %421 = vmatpush.msra.mxu0 %v410
        %422 = vmatpush.msra.mxu0 %v409
        %423 = vmatpush.msra.mxu0 %v408
        %424 = vmatpush.msra.mxu0 %v407
        %425 = vmatpush.msra.mxu0 %v406
        %426 = vmatpush.msra.mxu0 %v405
        %427 = vmatpush.msra.mxu0 %v404
        %428 = vmatpush.msra.mxu0 %v403
        %429 = vmatpush.msra.mxu0 %v402
        %430 = vmatpush.msra.mxu0 %v401
        %431 = vmatpush.msra.mxu0 %v400
        %432 = vmatmul.f32.gmra.mxu0 %v365
        %v433 = vpop.f32.mrf.mxu0
        %v434 = vadd.f32 0.0, %v433
        %435 = vmatmul.f32.gmra.mxu0 %v366
        %v436 = vpop.f32.mrf.mxu0
        %v437 = vadd.f32 0.0, %v436
        %438 = vdwg.mxu0
        %439 = vmatpush.msra.mxu0 %v398
        %440 = vmatpush.msra.mxu0 %v397
        %441 = vmatpush.msra.mxu0 %v396
        %442 = vmatpush.msra.mxu0 %v395
        %443 = vmatpush.msra.mxu0 %v394
        %444 = vmatpush.msra.mxu0 %v393
        %445 = vmatpush.msra.mxu0 %v392
        %446 = vmatpush.msra.mxu0 %v391
        %447 = vmatpush.msra.mxu0 %v390
        %448 = vmatpush.msra.mxu0 %v389
        %449 = vmatpush.msra.mxu0 %v388
        %450 = vmatpush.msra.mxu0 %v387
        %451 = vmatpush.msra.mxu0 %v386
        %452 = vmatpush.msra.mxu0 %v385
        %453 = vmatpush.msra.mxu0 %v384
        %454 = vmatpush.msra.mxu0 %v383
        %455 = vmatmul.f32.gmra.mxu0 %v375
        %v456 = vpop.f32.mrf.mxu0
        %v457 = vadd.f32 %v434, %v456
        %458 = vmatmul.f32.gmra.mxu0 %v372
        %v459 = vpop.f32.mrf.mxu0
        %v460 = vadd.f32 %v437, %v459
        %461 = vdwg.mxu0
        %s462 = scalar_lea.vmem [#allocation2], 256
        %v463 = vld [vmem:[%s462] sm:$0xff]
        %v464 = vld [vmem:[%s462 + $0x8] sm:$0xff]
        %v465 = vld [vmem:[%s462 + $0x10] sm:$0xff]
        %v466 = vld [vmem:[%s462 + $0x18] sm:$0xff]
        %v467 = vld [vmem:[%s462 + $0x20] sm:$0xff]
        %v468 = vld [vmem:[%s462 + $0x28] sm:$0xff]
        %v469 = vld [vmem:[%s462 + $0x30] sm:$0xff]
        %v470 = vld [vmem:[%s462 + $0x38] sm:$0xff]
        %v471 = vld [vmem:[%s462 + $0x40] sm:$0xff]
        %v472 = vld [vmem:[%s462 + $0x48] sm:$0xff]
        %v473 = vld [vmem:[%s462 + $0x50] sm:$0xff]
        %v474 = vld [vmem:[%s462 + $0x58] sm:$0xff]
        %v475 = vld [vmem:[%s462 + $0x60] sm:$0xff]
        %v476 = vld [vmem:[%s462 + $0x68] sm:$0xff]
        %v477 = vld [vmem:[%s462 + $0x70] sm:$0xff]
        %v478 = vld [vmem:[%s462 + $0x78] sm:$0xff]
        %479 = vmatpush.msra.mxu0 %v478
        %480 = vmatpush.msra.mxu0 %v477
        %481 = vmatpush.msra.mxu0 %v476
        %482 = vmatpush.msra.mxu0 %v475
        %483 = vmatpush.msra.mxu0 %v474
        %484 = vmatpush.msra.mxu0 %v473
        %485 = vmatpush.msra.mxu0 %v472
        %486 = vmatpush.msra.mxu0 %v471
        %487 = vmatpush.msra.mxu0 %v470
        %488 = vmatpush.msra.mxu0 %v469
        %489 = vmatpush.msra.mxu0 %v468
        %490 = vmatpush.msra.mxu0 %v467
        %491 = vmatpush.msra.mxu0 %v466
        %492 = vmatpush.msra.mxu0 %v465
        %493 = vmatpush.msra.mxu0 %v464
        %494 = vmatpush.msra.mxu0 %v463
        %495 = vmatmul.f32.gmra.mxu0 %v379
        %v496 = vpop.f32.mrf.mxu0
        %v497 = vadd.f32 0.0, %v496
        %498 = vmatmul.f32.gmra.mxu0 %v382
        %v499 = vpop.f32.mrf.mxu0
        %v500 = vadd.f32 0.0, %v499
        %501 = vdwg.mxu0
        %v502 = vadd.f32 %v457, %v497
        %v503 = vadd.f32 %v460, %v500
        %v504 = vld [vmem:[%s2] sm:$0x1]
        %v506 = vperm.slane %v504, 0
        %v508 = vadd.f32 %v502, %v506
        %v509 = vadd.f32 %v503, %v506
        %vm510 = vcmp.ge.f32.partialorder %v508, 0.0
        %vm511 = vcmp.ge.f32.partialorder %v509, 0.0
        %v512 = vmul.f32 %v508, 0.1
        %v513 = vmul.f32 %v509, 0.1
        %v514 = vsel %vm510, %v508, %v512
        %v515 = vsel %vm511, %v509, %v513
        %v518 = vrot.slane %v514, 7
        %v519 = vrot.slane %v515, 7
        %v520 = vsel %vm369, %v518, %v519
        %v523 = vsel %vm369, 0.0, %v518
        %v524 = vrot.slane %v514, 1
        %v525 = vrot.slane %v515, 1
        %v526 = vsel %vm376, %v524, %v525
        %v529 = vsel %vm376, %v525, 0.0
        %v530 = vld [vmem:[#allocation5] sm:$0xff]
        %v531 = vld [vmem:[#allocation5 + $0x8] sm:$0xff]
        %v532 = vld [vmem:[#allocation5 + $0x10] sm:$0xff]
        %v533 = vld [vmem:[#allocation5 + $0x18] sm:$0xff]
        %v534 = vld [vmem:[#allocation5 + $0x20] sm:$0xff]
        %v535 = vld [vmem:[#allocation5 + $0x28] sm:$0xff]
        %v536 = vld [vmem:[#allocation5 + $0x30] sm:$0xff]
        %v537 = vld [vmem:[#allocation5 + $0x38] sm:$0xff]
        %v538 = vld [vmem:[#allocation5 + $0x40] sm:$0xff]
        %v539 = vld [vmem:[#allocation5 + $0x48] sm:$0xff]
        %v540 = vld [vmem:[#allocation5 + $0x50] sm:$0xff]
        %v541 = vld [vmem:[#allocation5 + $0x58] sm:$0xff]
        %v542 = vld [vmem:[#allocation5 + $0x60] sm:$0xff]
        %v543 = vld [vmem:[#allocation5 + $0x68] sm:$0xff]
        %v544 = vld [vmem:[#allocation5 + $0x70] sm:$0xff]
        %v545 = vld [vmem:[#allocation5 + $0x78] sm:$0xff]
        %s546 = scalar_lea.vmem [#allocation5], 128
        %v547 = vld [vmem:[%s546] sm:$0xff]
        %v548 = vld [vmem:[%s546 + $0x8] sm:$0xff]
        %v549 = vld [vmem:[%s546 + $0x10] sm:$0xff]
        %v550 = vld [vmem:[%s546 + $0x18] sm:$0xff]
        %v551 = vld [vmem:[%s546 + $0x20] sm:$0xff]
        %v552 = vld [vmem:[%s546 + $0x28] sm:$0xff]
        %v553 = vld [vmem:[%s546 + $0x30] sm:$0xff]
        %v554 = vld [vmem:[%s546 + $0x38] sm:$0xff]
        %v555 = vld [vmem:[%s546 + $0x40] sm:$0xff]
        %v556 = vld [vmem:[%s546 + $0x48] sm:$0xff]
        %v557 = vld [vmem:[%s546 + $0x50] sm:$0xff]
        %v558 = vld [vmem:[%s546 + $0x58] sm:$0xff]
        %v559 = vld [vmem:[%s546 + $0x60] sm:$0xff]
        %v560 = vld [vmem:[%s546 + $0x68] sm:$0xff]
        %v561 = vld [vmem:[%s546 + $0x70] sm:$0xff]
        %v562 = vld [vmem:[%s546 + $0x78] sm:$0xff]
        %563 = vmatpush.msra.mxu0 %v562
        %564 = vmatpush.msra.mxu0 %v561
        %565 = vmatpush.msra.mxu0 %v560
        %566 = vmatpush.msra.mxu0 %v559
        %567 = vmatpush.msra.mxu0 %v558
        %568 = vmatpush.msra.mxu0 %v557
        %569 = vmatpush.msra.mxu0 %v556
        %570 = vmatpush.msra.mxu0 %v555
        %571 = vmatpush.msra.mxu0 %v554
        %572 = vmatpush.msra.mxu0 %v553
        %573 = vmatpush.msra.mxu0 %v552
        %574 = vmatpush.msra.mxu0 %v551
        %575 = vmatpush.msra.mxu0 %v550
        %576 = vmatpush.msra.mxu0 %v549
        %577 = vmatpush.msra.mxu0 %v548
        %578 = vmatpush.msra.mxu0 %v547
        %579 = vmatmul.f32.gmra.mxu0 %v514
        %v580 = vpop.f32.mrf.mxu0
        %v581 = vadd.f32 0.0, %v580
        %582 = vmatmul.f32.gmra.mxu0 %v515
        %v583 = vpop.f32.mrf.mxu0
        %v584 = vadd.f32 0.0, %v583
        %585 = vdwg.mxu0
        %586 = vmatpush.msra.mxu0 %v545
        %587 = vmatpush.msra.mxu0 %v544
        %588 = vmatpush.msra.mxu0 %v543
        %589 = vmatpush.msra.mxu0 %v542
        %590 = vmatpush.msra.mxu0 %v541
        %591 = vmatpush.msra.mxu0 %v540
        %592 = vmatpush.msra.mxu0 %v539
        %593 = vmatpush.msra.mxu0 %v538
        %594 = vmatpush.msra.mxu0 %v537
        %595 = vmatpush.msra.mxu0 %v536
        %596 = vmatpush.msra.mxu0 %v535
        %597 = vmatpush.msra.mxu0 %v534
        %598 = vmatpush.msra.mxu0 %v533
        %599 = vmatpush.msra.mxu0 %v532
        %600 = vmatpush.msra.mxu0 %v531
        %601 = vmatpush.msra.mxu0 %v530
        %602 = vmatmul.f32.gmra.mxu0 %v523
        %v603 = vpop.f32.mrf.mxu0
        %v604 = vadd.f32 %v581, %v603
        %605 = vmatmul.f32.gmra.mxu0 %v520
        %v606 = vpop.f32.mrf.mxu0
        %v607 = vadd.f32 %v584, %v606
        %608 = vdwg.mxu0
        %s609 = scalar_lea.vmem [#allocation5], 256
        %v610 = vld [vmem:[%s609] sm:$0xff]
        %v611 = vld [vmem:[%s609 + $0x8] sm:$0xff]
        %v612 = vld [vmem:[%s609 + $0x10] sm:$0xff]
        %v613 = vld [vmem:[%s609 + $0x18] sm:$0xff]
        %v614 = vld [vmem:[%s609 + $0x20] sm:$0xff]
        %v615 = vld [vmem:[%s609 + $0x28] sm:$0xff]
        %v616 = vld [vmem:[%s609 + $0x30] sm:$0xff]
        %v617 = vld [vmem:[%s609 + $0x38] sm:$0xff]
        %v618 = vld [vmem:[%s609 + $0x40] sm:$0xff]
        %v619 = vld [vmem:[%s609 + $0x48] sm:$0xff]
        %v620 = vld [vmem:[%s609 + $0x50] sm:$0xff]
        %v621 = vld [vmem:[%s609 + $0x58] sm:$0xff]
        %v622 = vld [vmem:[%s609 + $0x60] sm:$0xff]
        %v623 = vld [vmem:[%s609 + $0x68] sm:$0xff]
        %v624 = vld [vmem:[%s609 + $0x70] sm:$0xff]
        %v625 = vld [vmem:[%s609 + $0x78] sm:$0xff]
        %626 = vmatpush.msra.mxu0 %v625
        %627 = vmatpush.msra.mxu0 %v624
        %628 = vmatpush.msra.mxu0 %v623
        %629 = vmatpush.msra.mxu0 %v622
        %630 = vmatpush.msra.mxu0 %v621
        %631 = vmatpush.msra.mxu0 %v620
        %632 = vmatpush.msra.mxu0 %v619
        %633 = vmatpush.msra.mxu0 %v618
        %634 = vmatpush.msra.mxu0 %v617
        %635 = vmatpush.msra.mxu0 %v616
        %636 = vmatpush.msra.mxu0 %v615
        %637 = vmatpush.msra.mxu0 %v614
        %638 = vmatpush.msra.mxu0 %v613
        %639 = vmatpush.msra.mxu0 %v612
        %640 = vmatpush.msra.mxu0 %v611
        %641 = vmatpush.msra.mxu0 %v610
        %642 = vmatmul.f32.gmra.mxu0 %v526
        %v643 = vpop.f32.mrf.mxu0
        %v644 = vadd.f32 0.0, %v643
        %645 = vmatmul.f32.gmra.mxu0 %v529
        %v646 = vpop.f32.mrf.mxu0
        %v647 = vadd.f32 0.0, %v646
        %648 = vdwg.mxu0
        %v649 = vadd.f32 %v604, %v644
        %v650 = vadd.f32 %v607, %v647
        %v651 = vld [vmem:[%s4] sm:$0x1]
        %v653 = vperm.slane %v651, 0
        %v655 = vadd.f32 %v649, %v653
        %v656 = vadd.f32 %v650, %v653
        %v657 = vadd.f32 %v655, %v656
        %v658 = vrot.slane %v657, 4
        %v659 = vadd.f32 %v657, %v658
        %v660 = vrot.slane %v659, 2
        %v661 = vadd.f32 %v659, %v660
        %v662 = vrot.slane %v661, 1
        %v663 = vadd.f32 %v661, %v662
        %v664 = vld [vmem:[%s5] sm:$0xff]
        %v665 = vld [vmem:[%s5 + $0x8] sm:$0xff]
        %v666 = vld [vmem:[%s5 + $0x10] sm:$0xff]
        %v667 = vld [vmem:[%s5 + $0x18] sm:$0xff]
        %v668 = vld [vmem:[%s5 + $0x20] sm:$0xff]
        %v669 = vld [vmem:[%s5 + $0x28] sm:$0xff]
        %v670 = vld [vmem:[%s5 + $0x30] sm:$0xff]
        %v671 = vld [vmem:[%s5 + $0x38] sm:$0xff]
        %v672 = vld [vmem:[%s5 + $0x40] sm:$0xff]
        %v673 = vld [vmem:[%s5 + $0x48] sm:$0xff]
        %v674 = vld [vmem:[%s5 + $0x50] sm:$0xff]
        %v675 = vld [vmem:[%s5 + $0x58] sm:$0xff]
        %v676 = vld [vmem:[%s5 + $0x60] sm:$0xff]
        %v677 = vld [vmem:[%s5 + $0x68] sm:$0xff]
        %v678 = vld [vmem:[%s5 + $0x70] sm:$0xff]
        %v679 = vld [vmem:[%s5 + $0x78] sm:$0xff]
        %v680 = vld [vmem:[%s6] sm:$0x1]
        %681 = vmatpush.msra.mxu0 %v679
        %682 = vmatpush.msra.mxu0 %v678
        %683 = vmatpush.msra.mxu0 %v677
        %684 = vmatpush.msra.mxu0 %v676
        %685 = vmatpush.msra.mxu0 %v675
        %686 = vmatpush.msra.mxu0 %v674
        %687 = vmatpush.msra.mxu0 %v673
        %688 = vmatpush.msra.mxu0 %v672
        %689 = vmatpush.msra.mxu0 %v671
        %690 = vmatpush.msra.mxu0 %v670
        %691 = vmatpush.msra.mxu0 %v669
        %692 = vmatpush.msra.mxu0 %v668
        %693 = vmatpush.msra.mxu0 %v667
        %694 = vmatpush.msra.mxu0 %v666
        %695 = vmatpush.msra.mxu0 %v665
        %696 = vmatpush.msra.mxu0 %v664
        %697 = vmatmul.f32.gmra.mxu0 %v663
        %v698 = vpop.f32.mrf.mxu0
        %v699 = vadd.f32 %v680, %v698
        %700 = vdwg.mxu0
        %vm701 = vcmp.ge.f32.partialorder %v699, 0.0
        %v702 = vmul.f32 %v699, 0.1
        %v703 = vsel %vm701, %v699, %v702
        %v704 = vld [vmem:[%s7] sm:$0x3]
        %v705 = vld [vmem:[%s8] sm:$0x1]
        %vm706 = vcmask 15360
        %v708 = vsel %vm706, %v703, 0
        %vm710 = vcmask 1041408
        %v712 = vsel %vm710, %v704, 0
        %714 = vmatpush.msra.mxu0 0.0
        %715 = vmatpush.msra.mxu0 0.0
        %716 = vmatpush.msra.mxu0 0.0
        %717 = vmatpush.msra.mxu0 0.0
        %718 = vmatpush.msra.mxu0 0.0
        %719 = vmatpush.msra.mxu0 0.0
        %720 = vmatpush.msra.mxu0 0.0
        %721 = vmatpush.msra.mxu0 0.0
        %722 = vmatpush.msra.mxu0 0.0
        %723 = vmatpush.msra.mxu0 0.0
        %724 = vmatpush.msra.mxu0 0.0
        %725 = vmatpush.msra.mxu0 0.0
        %726 = vmatpush.msra.mxu0 0.0
        %727 = vmatpush.msra.mxu0 0.0
        %728 = vmatpush.msra.mxu0 0.0
        %729 = vmatpush.msra.mxu0 %v712
        %730 = vmatmul.f32.gmra.mxu0 %v708
        %v731 = vpop.f32.mrf.mxu0
        %v732 = vadd.f32 %v705, %v731
        %733 = vdwg.mxu0
        %v734 = vxor.u32 %v732, 2147483648
        %v735 = vmul.f32 %v734, 1.442695
        %v736 = vpow.pop %v735
        %v737 = vadd.f32 %v736, 1.0
        %v738 = vrcp.pop %v737
        %v739 = vmul.f32 %v737, %v738
        %v740 = vsub.f32 1.0, %v739
        %v741 = vmul.f32 %v738, %v740
        %v742 = vadd.f32 %v738, %v741
        %vm743 = vweird.f32 %v737
        %vm744 = vweird.f32 %v738
        %vm745 = vmor %vm743, %vm744
        %v746 = vsel %vm745, %v738, %v742
        %v747 = vand.u32 2147483647, %v737
        %vm748 = vcmp.eq.f32.partialorder %v747, 8.507059e+37
        %v749 = vand.u32 %v737, 2147483648
        %v750 = vor.u32 1.1754944e-38, %v749
        %v751 = vsel %vm748, %v750, %v746
        %v752 = vmul.f32 1.0, %v751
        %v753 = vperm.slane %v752, 0
        %v754 = vmul.f32 %v655, %v753
        %v755 = vmul.f32 %v656, %v753
        %v756 = vadd.f32 %v754, %v365
        %v757 = vadd.f32 %v755, %v366
        %758 = vst [vmem:[%s359] sm:$0xff] %v756
        %759 = vst [vmem:[%s359 + $0x8] sm:$0xff] %v757
        %s760 = sand.u32 %s227, 1
        %s761 = scalar_lea.sflag [#allocation4], %s760
        %s762 = sand.u32 %s227, 1
        %s763 = smul.addr %s762, 16
        %s764 = scalar_lea.vmem [#allocation7], %s763
        // Predicated region
        $region65: #{tpu_custom_call.1} parent=55 // pred_check
          %p765 = pneg %p237
        $region66: #{tpu_custom_call.1} parent=55 // pred_check_branch
          %767 = sbr.rel (%p765) target = $region68
        $region67: #{tpu_custom_call.1} parent=55 // pred_region
          %769 = vsyncadd %s761, 0
          %s770 = smul.addr %s25, 2
          %s771 = smul.addr %s770, 8
          %s772 = scalar_lea.hbm %s9, %s771
          %s773 = sshll.u32 %s764, 4
          %s774 = int_to_ptr.vmem [resolvable:$true] %s773
          %s775 = sshll.u32 %s772, 4
          %s776 = int_to_ptr.hbm [resolvable:$true] %s775
          %781 = dma.vmem_to_hbm [thread:$0]  %s774, 256, %s776, %s761, 128, 128, 8
        $region68: #{tpu_custom_call.1} parent=55 // pred_fallthru
          _
      $region56: #{tpu_custom_call.1} parent=5 // pred_fallthru
        _
      %p782 = scmp.le.s32.totalorder 2, %s20
      // Predicated region
      $region69: #{tpu_custom_call.1} parent=5 // pred_check
        %p783 = pneg %p782
      $region70: #{tpu_custom_call.1} parent=5 // pred_check_branch
        %785 = sbr.rel (%p783) target = $region72
      $region71: #{tpu_custom_call.1} parent=5 // pred_region
        %s786 = ssub.s32 %s20, 2
        // Predicated region
        $region73: #{tpu_custom_call.1} parent=71 // pred_check
          %p787 = pneg %p243
        $region74: #{tpu_custom_call.1} parent=71 // pred_check_branch
          %789 = sbr.rel (%p787) target = $region76
        $region75: #{tpu_custom_call.1} parent=71 // pred_region
          %s790 = sand.u32 %s228, 1
          %s791 = scalar_lea.sflag [#allocation4], %s790
          %s792 = sand.u32 %s228, 1
          %s793 = smul.addr %s792, 16
          %s794 = scalar_lea.vmem [#allocation7], %s793
          %796 = dma.done %s791, 256
        $region76: #{tpu_custom_call.1} parent=71 // pred_fallthru
          _
      $region72: #{tpu_custom_call.1} parent=5 // pred_fallthru
        _
    $region6: #{tpu_custom_call.1} parent=1 // loop_footer
      %s24 = sadd.s32 1, %s20
    $region7: #{tpu_custom_call.1} parent=1 // loop_footer_branch
      %19 = sbr.rel target = $region3
    $region8: #{tpu_custom_call.1} parent=1 // loop_exit
      _
    %797 = vsyncpa [#allocation3], 1
    %s798 = scalar_lea.sflag [#allocation3], 1
    %799 = vsyncpa %s798, 1
    %800 = vsyncpa [#allocation6], 1
    %801 = vsyncpa [#allocation4], 1
    %s802 = scalar_lea.sflag [#allocation4], 1
    %803 = vsyncpa %s802, 1

</llo_original>
